<compile_context>
chip_gen: v7x
topology: tpu7x:2x2x1
jax: 0.10.0
libtpu: 0.0.40
codegen_flags: <defaults>
</compile_context>

<pallas_src>
import functools

import jax
import jax.numpy as jnp
from jax.experimental import pallas as pl
from jax.experimental.pallas import tpu as pltpu


# ----------------------------------------------------------------------------
# Helpers
# ----------------------------------------------------------------------------
def _round_up(x, m):
    return ((x + m - 1) // m) * m


def _cdiv(a, b):
    return (a + b - 1) // b


def _sublane_pack(dtype):
    # rows per packed sublane group: f32 -> 8, bf16 -> 16, int8/fp8 -> 32
    return {4: 8, 2: 16, 1: 32}.get(jnp.dtype(dtype).itemsize, 8)


# Conservative per-kernel VMEM working-set budget; fits the 32 MiB scoped
# default on v6e/v7x and leaves headroom under v7x's 64 MiB physical VMEM.
_VMEM_BUDGET = 20 * 1024 * 1024
_VMEM_LIMIT_BYTES = 32 * 1024 * 1024


# ----------------------------------------------------------------------------
# Kernels
# ----------------------------------------------------------------------------
def _linear_kernel_single_k(x_ref, w_ref, b_ref, o_ref):
    """Whole reduction dim in one step: no scratch accumulator needed.

    x_ref: (tm, Dp)  w_ref: (Dp, tn)  b_ref: (1, tn)  o_ref: (tm, tn)
    """
    acc = jnp.dot(x_ref[...].astype(w_ref.dtype), w_ref[...],
                  preferred_element_type=jnp.float32)
    o_ref[...] = (acc + b_ref[...].astype(jnp.float32)).astype(o_ref.dtype)


def _linear_kernel_multi_k(x_ref, w_ref, b_ref, o_ref, acc_ref):
    """K-reduction over grid axis 2 with an f32 VMEM accumulator.

    NOTE: relies on the K axis being the innermost grid axis and marked
    "arbitrary"; do not reorder or parallelize it.
    x_ref: (tm, tk)  w_ref: (tk, tn)  b_ref: (1, tn)
    o_ref: (tm, tn)  acc_ref: VMEM (tm, tn) f32
    """
    k = pl.program_id(2)

    @pl.when(k == 0)
    def _init():
        acc_ref[...] = jnp.zeros_like(acc_ref)

    acc_ref[...] += jnp.dot(x_ref[...].astype(w_ref.dtype), w_ref[...],
                            preferred_element_type=jnp.float32)

    @pl.when(k == pl.num_programs(2) - 1)
    def _finalize():
        o_ref[...] = (acc_ref[...] + b_ref[...].astype(jnp.float32)
                      ).astype(o_ref.dtype)


# ----------------------------------------------------------------------------
# Parameter preparation (done ONCE, outside the per-step forward)
# ----------------------------------------------------------------------------
def prepare_classifier_params(weight, bias, *, param_dtype=jnp.bfloat16,
                              tn_max=512, tk_max=2048):
    """Pre-transpose, zero-pad to tile multiples, and cast weights (once).

    weight: (C, D) PyTorch nn.Linear layout.  bias: (C,).
    Returns (w_t (Dp, Cp) param_dtype, bias (1, Cp) f32, meta dict).
    """
    C, D = weight.shape

    # Lane-dense class tiles (multiples of 128).  Keep >= 2 class tiles when
    # C allows so both v7x TensorCores stay busy even with a single batch tile.
    Cp0 = _round_up(C, 128)
    nt = max(_cdiv(Cp0, tn_max), 2 if Cp0 >= 256 else 1)
    tn = _round_up(_cdiv(Cp0, nt), 128)
    Cp = nt * tn

    # Reduction tiles: as large as tk_max allows, with kt * tk == Dp exactly
    # (no weight-padding waste beyond 128 alignment).
    Dp0 = _round_up(D, 128)
    kt = _cdiv(Dp0, tk_max)
    tk = _round_up(_cdiv(Dp0, kt), 128)
    Dp = kt * tk

    w_t = jnp.pad(weight.T, ((0, Dp - D), (0, Cp - C))).astype(param_dtype)
    b2 = jnp.pad(bias.reshape(1, C).astype(jnp.float32),
                 ((0, 0), (0, Cp - C)))
    meta = dict(C=C, D=D, Cp=Cp, Dp=Dp, tn=tn, tk=tk)
    return w_t, b2, meta


# ----------------------------------------------------------------------------
# Forward
# ----------------------------------------------------------------------------
@functools.partial(
    jax.jit, static_argnames=("C", "Cp", "Dp", "tn", "tk", "tm", "w_buffers"))
def _classifier_forward_padded(x, w_t, b2, *, C, Cp, Dp, tn, tk, tm, w_buffers):
    B, D = x.shape
    Bp = _round_up(B, tm)

    # Skip the extra HBM round-trip when the activations are already aligned.
    if (Bp != B) or (Dp != D):
        x = jnp.pad(x, ((0, Bp - B), (0, Dp - D)))

    mt, nt, kt = Bp // tm, Cp // tn, Dp // tk
    out_dtype = x.dtype

    flops = 2 * Bp * Dp * Cp
    bytes_accessed = (
        jnp.dtype(x.dtype).itemsize * Bp * Dp * nt        # x re-read per class tile
        + jnp.dtype(w_t.dtype).itemsize * Dp * Cp * mt    # W re-read per batch tile
        + jnp.dtype(out_dtype).itemsize * Bp * Cp)        # output written once
    cost = pl.CostEstimate(flops=flops, transcendentals=0,
                           bytes_accessed=bytes_accessed)

    w_spec_kwargs = {}
    if w_buffers > 2:
        # Deeper pipelining on the (large) weight tiles if DMA is exposed.
        w_spec_kwargs["pipeline_mode"] = pl.Buffered(w_buffers)

    if kt == 1:
        # Fast path: whole reduction in one step, no scratch accumulator.
        out_p = pl.pallas_call(
            _linear_kernel_single_k,
            out_shape=jax.ShapeDtypeStruct((Bp, Cp), out_dtype),
            grid_spec=pltpu.PrefetchScalarGridSpec(
                num_scalar_prefetch=0,
                grid=(mt, nt),
                in_specs=[
                    pl.BlockSpec((tm, tk), lambda i, j: (i, 0)),              # x
                    pl.BlockSpec((tk, tn), lambda i, j: (0, j),
                                 **w_spec_kwargs),                            # W^T
                    pl.BlockSpec((1, tn), lambda i, j: (0, j)),               # bias
                ],
                out_specs=pl.BlockSpec((tm, tn), lambda i, j: (i, j)),
            ),
            compiler_params=pltpu.CompilerParams(
                dimension_semantics=("parallel", "parallel"),
                vmem_limit_bytes=_VMEM_LIMIT_BYTES),
            cost_estimate=cost,
        )(x, w_t, b2)
    else:
        out_p = pl.pallas_call(
            _linear_kernel_multi_k,
            out_shape=jax.ShapeDtypeStruct((Bp, Cp), out_dtype),
            grid_spec=pltpu.PrefetchScalarGridSpec(
                num_scalar_prefetch=0,
                grid=(mt, nt, kt),
                in_specs=[
                    pl.BlockSpec((tm, tk), lambda i, j, k: (i, k)),           # x
                    pl.BlockSpec((tk, tn), lambda i, j, k: (k, j),
                                 **w_spec_kwargs),                            # W^T
                    pl.BlockSpec((1, tn), lambda i, j, k: (0, j)),            # bias
                ],
                out_specs=pl.BlockSpec((tm, tn), lambda i, j, k: (i, j)),
                scratch_shapes=[pltpu.VMEM((tm, tn), jnp.float32)],
            ),
            compiler_params=pltpu.CompilerParams(
                # K axis must stay innermost + "arbitrary" for the accumulator.
                dimension_semantics=("parallel", "parallel", "arbitrary"),
                vmem_limit_bytes=_VMEM_LIMIT_BYTES),
            cost_estimate=cost,
        )(x, w_t, b2)

    return out_p[:B, :C]


def classifier_forward(x, w_t, b2, meta, *, w_buffers=2):
    """forward(x) = x @ W^T + b.  x: (..., D).  Params from prepare_classifier_params."""
    D, C = meta["D"], meta["C"]
    Cp, Dp, tn, tk = meta["Cp"], meta["Dp"], meta["tn"], meta["tk"]
    lead = x.shape[:-1]
    x2 = x.reshape(-1, D)
    B = x2.shape[0]

    # Pick tm: cover the whole (padded) batch in one i-tile whenever the
    # double-buffered working set fits the VMEM budget, so the weight matrix
    # is streamed from HBM exactly once.  Round to the dtype's sublane packing.
    pack = _sublane_pack(x2.dtype)
    x_bytes = jnp.dtype(x2.dtype).itemsize
    w_bytes = jnp.dtype(w_t.dtype).itemsize
    out_bytes = x_bytes
    kt = Dp // tk
    fixed = max(w_buffers, 2) * tk * tn * w_bytes + 2 * tn * 4   # W tiles + bias
    per_row = (2 * tk * x_bytes                                  # x double buffer
               + 2 * tn * out_bytes                              # out double buffer
               + (tn * 4 if kt > 1 else 0))                      # f32 accumulator
    tm_cap = max(pack, ((_VMEM_BUDGET - fixed) // per_row) // pack * pack)
    tm = min(_round_up(B, pack), tm_cap)
    # NOTE: tm depends on B, so each distinct batch size compiles its own
    # pallas_call; bucket/pad the batch upstream if batch sizes vary a lot.

    out = _classifier_forward_padded(
        x2, w_t, b2, C=C, Cp=Cp, Dp=Dp, tn=tn, tk=tk, tm=int(tm),
        w_buffers=w_buffers)
    return out.reshape(*lead, C)


# ----------------------------------------------------------------------------
# Demo / self-check
# ----------------------------------------------------------------------------
if __name__ == "__main__":
    def make_case(key, B, D, C):
        kx, kw, kb = jax.random.split(key, 3)
        x = jax.random.normal(kx, (B, D), dtype=jnp.float32)
        bound = 1.0 / (D ** 0.5)   # mimic nn.Linear uniform(-1/sqrt(D), 1/sqrt(D))
        weight = jax.random.uniform(kw, (C, D), minval=-bound, maxval=bound,
                                    dtype=jnp.float32)
        bias = jax.random.uniform(kb, (C,), minval=-bound, maxval=bound,
                                  dtype=jnp.float32)
        return x, weight, bias

    def check(out, x, weight, bias):
        # Kernel uses bf16 inputs with f32 accumulation -> compare tightly
        # against a bf16-rounded-input f32 reference, loosely against full f32.
        ref_f32 = x @ weight.T + bias
        ref_bf16 = (x.astype(jnp.bfloat16).astype(jnp.float32)
                    @ weight.T.astype(jnp.bfloat16).astype(jnp.float32) + bias)
        assert out.shape == ref_f32.shape, (out.shape, ref_f32.shape)
        assert jnp.allclose(out, ref_bf16, atol=1e-3, rtol=1e-3), float(
            jnp.max(jnp.abs(out - ref_bf16)))
        assert jnp.allclose(out, ref_f32, atol=5e-2, rtol=5e-2), float(
            jnp.max(jnp.abs(out - ref_f32)))

    key = jax.random.PRNGKey(0)
    k1, k2 = jax.random.split(key)

    # Case 1: module-sized shapes (batch=2, input_dim=32, num_classes=8).
    # Exercises the single-K-step fast path (no scratch accumulator).
    x, weight, bias = make_case(k1, 2, 32, 8)
    w_t, b2, meta = prepare_classifier_params(weight, bias)
    out = jax.block_until_ready(classifier_forward(x, w_t, b2, meta))
    check(out, x, weight, bias)

    # Case 2: small config forced into the multi-K accumulator path
    # (tk_max lowered so Dp // tk == 2).
    x, weight, bias = make_case(k2, 4, 256, 8)
    w_t, b2, meta = prepare_classifier_params(weight, bias, tk_max=128)
    out = jax.block_until_ready(classifier_forward(x, w_t, b2, meta))
    check(out, x, weight, bias)

    print("KERNEL_OK")
</pallas_src>

<mosaic_0001>
module attributes {stable_mosaic.version = 11 : i64} {
  func.func @_linear_kernel_single_k(%arg0: i32, %arg1: i32, %arg2: memref<8x128xf32, #tpu.memory_space<vmem>>, %arg3: memref<128x128xbf16, #tpu.memory_space<vmem>>, %arg4: memref<1x128xf32, #tpu.memory_space<vmem>>, %arg5: memref<8x128xf32, #tpu.memory_space<vmem>>) attributes {dimension_semantics = [#tpu.dimension_semantics<parallel>, #tpu.dimension_semantics<parallel>], iteration_bounds = array<i64: 1, 1>, scalar_prefetch = 0 : i64, scratch_operands = 0 : i64, tpu.core_type = #tpu.core_type<tc>, window_params = [{transform_indices = @transform_0, window_bounds = array<i64: 8, 128>}, {transform_indices = @transform_1, window_bounds = array<i64: 128, 128>}, {transform_indices = @transform_2, window_bounds = array<i64: 1, 128>}, {transform_indices = @transform_3, window_bounds = array<i64: 8, 128>}]} {
    %c0 = arith.constant 0 : index
    %c0_0 = arith.constant 0 : index
    %0 = vector.load %arg2[%c0, %c0_0] : memref<8x128xf32, #tpu.memory_space<vmem>>, vector<8x128xf32>
    %1 = arith.truncf %0 : vector<8x128xf32> to vector<8x128xbf16>
    %c0_1 = arith.constant 0 : index
    %c0_2 = arith.constant 0 : index
    %2 = vector.load %arg3[%c0_1, %c0_2] : memref<128x128xbf16, #tpu.memory_space<vmem>>, vector<128x128xbf16>
    %cst = arith.constant dense<0.000000e+00> : vector<8x128xf32>
    %3 = tpu.matmul %1, %2, %cst {dimension_numbers = #tpu.dot_dimension_numbers<[1], [0], [0], [1], [0, 0, 1, 1], [], []>} : vector<8x128xbf16>, vector<128x128xbf16>, vector<8x128xf32> -> vector<8x128xf32>
    %c0_3 = arith.constant 0 : index
    %c0_4 = arith.constant 0 : index
    %4 = vector.load %arg4[%c0_3, %c0_4] : memref<1x128xf32, #tpu.memory_space<vmem>>, vector<1x128xf32>
    %5 = vector.broadcast %4 : vector<1x128xf32> to vector<8x128xf32>
    %6 = arith.addf %3, %5 : vector<8x128xf32>
    %c0_5 = arith.constant 0 : index
    %c0_6 = arith.constant 0 : index
    %7 = vector.load %arg5[%c0_5, %c0_6] : memref<8x128xf32, #tpu.memory_space<vmem>>, vector<8x128xf32>
    tpu.vector_store %arg5[%c0_5, %c0_6], %6 {strides = array<i32>} : memref<8x128xf32, #tpu.memory_space<vmem>>, vector<8x128xf32>,
    return
  }
  func.func @transform_0(%arg0: i32, %arg1: i32) -> (i32, i32) {
    %c0_i32 = arith.constant 0 : i32
    %c0_i32_0 = arith.constant 0 : i32
    return %arg0, %c0_i32 : i32, i32
  }
  func.func @transform_1(%arg0: i32, %arg1: i32) -> (i32, i32) {
    %c0_i32 = arith.constant 0 : i32
    %c0_i32_0 = arith.constant 0 : i32
    return %c0_i32, %arg1 : i32, i32
  }
  func.func @transform_2(%arg0: i32, %arg1: i32) -> (i32, i32) {
    %c0_i32 = arith.constant 0 : i32
    %c0_i32_0 = arith.constant 0 : i32
    return %c0_i32, %arg1 : i32, i32
  }
  func.func @transform_3(%arg0: i32, %arg1: i32) -> (i32, i32) {
    %c0_i32 = arith.constant 0 : i32
    return %arg0, %arg1 : i32, i32
  }
}

</mosaic_0001>

<llo_original>
// kernel: _classifier_forward_padded.1
$region0: #{_classifier_forward_padded.1}
  #allocation0 [shape = 'u32[]', space=smem, size = 0x4, offset = 0x4, fixed_abs, tag = 'smem constant byte address 0x4 - core index']
  #allocation1 [shape = 'u32[144,128]{1,0:T(1,128)}', space=vmem, size = 0x12000, scoped, tag = 'internal scratch']
  %s0 = inlined_call_operand.vmem [shape: f32[8,128], index: 0, kind: input, shape index: {}]
  %s1 = inlined_call_operand.hbm [shape: bf16[128,128], index: 1, kind: input, shape index: {}]
  %s2 = inlined_call_operand.vmem [shape: f32[1,128], index: 2, kind: input, shape index: {}]
  %s3 = inlined_call_operand.vmem [shape: f32[8,128], index: 3, kind: output, shape index: {}]
  %s4 = sld [smem:[#allocation0]]
  $region26: #{_classifier_forward_padded.1} parent=0
    _
  %s6 = ssub.s32 1, %s4
  %s7 = scalar_select 0, %s6, %s4
  $region1: #{_classifier_forward_padded.1} parent=0
    #allocation2 [shape = 'u8[32768]{0}', space=vmem, size = 0x8000, scoped, tag = 'input window, operand 1, single buffered']
    #allocation3 [shape = 's32[1]{0}', space=sflag, size = 0x4, scoped, tag = 'scoped memory for _classifier_forward_padded.1']
    %8 = vsyncpa [#allocation3], 0
    // Predicated region
    $region2: #{_classifier_forward_padded.1} parent=1 // pred_check
      _
    $region3: #{_classifier_forward_padded.1} parent=1 // pred_check_branch
      %10 = sbr.rel (0) target = $region5
    $region4: #{_classifier_forward_padded.1} parent=1 // pred_region
      _
    $region5: #{_classifier_forward_padded.1} parent=1 // pred_fallthru
      _
    // Predicated region
    $region6: #{_classifier_forward_padded.1} parent=1 // pred_check
      _
    $region7: #{_classifier_forward_padded.1} parent=1 // pred_check_branch
      %12 = sbr.rel (0) target = $region9
    $region8: #{_classifier_forward_padded.1} parent=1 // pred_region
      %s14 = ssub.s32 1024, 1024
      %15 = vsyncadd [#allocation3], %s14
      %s16 = sshll.u32 [#allocation2], 4
      %s17 = int_to_ptr.vmem [resolvable:$true] %s16
      %22 = dma.hbm_to_vmem [thread:$0]  %s1, 1024, %s17, [#allocation3], 64, 64, 4
    $region9: #{_classifier_forward_padded.1} parent=1 // pred_fallthru
      _
    // Predicated region
    $region10: #{_classifier_forward_padded.1} parent=1 // pred_check
      _
    $region11: #{_classifier_forward_padded.1} parent=1 // pred_check_branch
      %24 = sbr.rel (0) target = $region13
    $region12: #{_classifier_forward_padded.1} parent=1 // pred_region
      _
    $region13: #{_classifier_forward_padded.1} parent=1 // pred_fallthru
      _
    // Predicated region
    $region14: #{_classifier_forward_padded.1} parent=1 // pred_check
      _
    $region15: #{_classifier_forward_padded.1} parent=1 // pred_check_branch
      %26 = sbr.rel (0) target = $region17
    $region16: #{_classifier_forward_padded.1} parent=1 // pred_region
      %27 = dma.done [#allocation3], 1024
    $region17: #{_classifier_forward_padded.1} parent=1 // pred_fallthru
      _
    %v29 = vld [vmem:[%s0] sm:$0xff]
    %v30 = vpack.c.bf16 %v29, %v29
    %v31 = vld [vmem:[#allocation2] sm:$0xf]
    %v32 = vld [vmem:[#allocation2 + $0x4] sm:$0xf]
    %v33 = vld [vmem:[#allocation2 + $0x8] sm:$0xf]
    %v34 = vld [vmem:[#allocation2 + $0xc] sm:$0xf]
    %v35 = vld [vmem:[#allocation2 + $0x10] sm:$0xf]
    %v36 = vld [vmem:[#allocation2 + $0x14] sm:$0xf]
    %v37 = vld [vmem:[#allocation2 + $0x18] sm:$0xf]
    %v38 = vld [vmem:[#allocation2 + $0x1c] sm:$0xf]
    %v39 = vld [vmem:[#allocation2 + $0x20] sm:$0xf]
    %v40 = vld [vmem:[#allocation2 + $0x24] sm:$0xf]
    %v41 = vld [vmem:[#allocation2 + $0x28] sm:$0xf]
    %v42 = vld [vmem:[#allocation2 + $0x2c] sm:$0xf]
    %v43 = vld [vmem:[#allocation2 + $0x30] sm:$0xf]
    %v44 = vld [vmem:[#allocation2 + $0x34] sm:$0xf]
    %v45 = vld [vmem:[#allocation2 + $0x38] sm:$0xf]
    %v46 = vld [vmem:[#allocation2 + $0x3c] sm:$0xf]
    %v47 = vld [vmem:[%s2] sm:$0x1]
    %v49 = vlaneseq
    %v50 = vshrl.u32 %v49, 7
    %v51 = vsub.s32 0, %v50
    %v52 = vrot.slane %v47, %v51
    %v70 = vunpack.c.l.b16 %v31
    %v71 = vunpack.c.l.b16 %v32
    %v72 = vunpack.c.l.b16 %v33
    %v73 = vunpack.c.l.b16 %v34
    %v74 = vunpack.c.l.b16 %v35
    %v75 = vunpack.c.l.b16 %v36
    %v76 = vunpack.c.l.b16 %v37
    %v77 = vunpack.c.l.b16 %v38
    %v78 = vunpack.c.l.b16 %v39
    %v79 = vunpack.c.l.b16 %v40
    %v80 = vunpack.c.l.b16 %v41
    %v81 = vunpack.c.l.b16 %v42
    %v82 = vunpack.c.l.b16 %v43
    %v83 = vunpack.c.l.b16 %v44
    %v84 = vunpack.c.l.b16 %v45
    %v85 = vunpack.c.l.b16 %v46
    %v86 = vpack.c.b16 %v71, %v70
    %v87 = vpack.c.b16 %v73, %v72
    %v88 = vpack.c.b16 %v75, %v74
    %v89 = vpack.c.b16 %v77, %v76
    %v90 = vpack.c.b16 %v79, %v78
    %v91 = vpack.c.b16 %v81, %v80
    %v92 = vpack.c.b16 %v83, %v82
    %v93 = vpack.c.b16 %v85, %v84
    %102 = vmatprep.subr.bf16.mxu0 0
    %103 = vmatpush1.bf16.msra.mxu0 %v86
    %104 = vmatprep.subr.bf16.mxu0 0
    %105 = vmatpush1.bf16.msra.mxu0 %v87
    %106 = vmatprep.subr.bf16.mxu0 0
    %107 = vmatpush1.bf16.msra.mxu0 %v88
    %108 = vmatprep.subr.bf16.mxu0 0
    %109 = vmatpush1.bf16.msra.mxu0 %v89
    %110 = vmatprep.subr.bf16.mxu0 0
    %111 = vmatpush1.bf16.msra.mxu0 %v90
    %112 = vmatprep.subr.bf16.mxu0 0
    %113 = vmatpush1.bf16.msra.mxu0 %v91
    %114 = vmatprep.subr.bf16.mxu0 0
    %115 = vmatpush1.bf16.msra.mxu0 %v92
    %116 = vmatprep.subr.bf16.mxu0 0
    %117 = vmatpush1.bf16.msra.mxu0 %v93
    %118 = vmatprep.subr.bf16.mxu0 0
    %119 = vmatpush1.bf16.msra.mxu0 0
    %120 = vmatprep.subr.bf16.mxu0 0
    %121 = vmatpush1.bf16.msra.mxu0 0
    %122 = vmatprep.subr.bf16.mxu0 0
    %123 = vmatpush1.bf16.msra.mxu0 0
    %124 = vmatprep.subr.bf16.mxu0 0
    %125 = vmatpush1.bf16.msra.mxu0 0
    %126 = vmatprep.subr.bf16.mxu0 0
    %127 = vmatpush1.bf16.msra.mxu0 0
    %128 = vmatprep.subr.bf16.mxu0 0
    %129 = vmatpush1.bf16.msra.mxu0 0
    %130 = vmatprep.subr.bf16.mxu0 0
    %131 = vmatpush1.bf16.msra.mxu0 0
    %132 = vmatprep.subr.bf16.mxu0 0
    %133 = vmatpush1.bf16.msra.mxu0 0
    %134 = vmatprep.mubr.bf16.mxu0 0
    %135 = vmatmul.mubr.bf16.gmra.mrb[0].mxu0 %v30
    %v136 = vpop.f32.mrb[0].mxu0
    %v137 = vadd.f32 %v52, %v136
    %v138 = vpop.f32.mrb[0].mxu0
    %v139 = vpop.f32.mrb[0].mxu0
    %v140 = vpop.f32.mrb[0].mxu0
    %141 = vdwg.mxu0
    %142 = vst [vmem:[%s3] sm:$0xff] %v137
    // Predicated region
    $region18: #{_classifier_forward_padded.1} parent=1 // pred_check
      _
    $region19: #{_classifier_forward_padded.1} parent=1 // pred_check_branch
      %144 = sbr.rel (0) target = $region21
    $region20: #{_classifier_forward_padded.1} parent=1 // pred_region
      _
    $region21: #{_classifier_forward_padded.1} parent=1 // pred_fallthru
      _
    // Predicated region
    $region22: #{_classifier_forward_padded.1} parent=1 // pred_check
      _
    $region23: #{_classifier_forward_padded.1} parent=1 // pred_check_branch
      %146 = sbr.rel (0) target = $region25
    $region24: #{_classifier_forward_padded.1} parent=1 // pred_region
      _
    $region25: #{_classifier_forward_padded.1} parent=1 // pred_fallthru
      _
    %147 = vsyncpa [#allocation3], 1

</llo_original>
